<compile_context>
chip_gen: v7x
topology: tpu7x:2x2x1
jax: 0.10.0
libtpu: 0.0.40
codegen_flags: <defaults>
</compile_context>

<pallas_src>
import jax
import jax.numpy as jnp
from jax.experimental import pallas as pl
from jax.experimental.pallas import tpu as pltpu


def _relu_kernel(x_ref, o_ref):
    x = x_ref[...]
    # Single VALU op; matches torch.relu semantics (-0.0 -> +0.0, NaN passes).
    o_ref[...] = jnp.maximum(x, jnp.zeros_like(x))


def _round_up(x: int, m: int) -> int:
    return ((x + m - 1) // m) * m


def _cdiv(a: int, b: int) -> int:
    return -(-a // b)


def _sublane_multiple(dtype) -> int:
    """Packed sublane count: 8 for 32-bit, 16 for 16-bit, 32 for 8-bit dtypes."""
    bits = jnp.dtype(dtype).itemsize * 8
    return max(8, 256 // bits)


_TARGET_BLOCK_BYTES = 4 * 1024 * 1024       # ~4 MiB per block
_VMEM_LIMIT_BYTES = 32 * 1024 * 1024        # 4x block (in+out, double-buffered) + headroom
_MIN_GRID_STEPS = 4                          # >= 2 steps per TC on v7x megacore
_PIPELINE_BYTES_THRESHOLD = 1 * 1024 * 1024  # only bother splitting medium+ inputs


def _choose_tiles(M, N, dtype):
    """Lane-dense, VMEM-safe tiles with a shape-independent (~4 MiB) budget."""
    itemsize = jnp.dtype(dtype).itemsize
    sub = _sublane_multiple(dtype)

    # Lane (last) dim: 128-multiple tile, capped at 2048. Pallas masks the
    # ragged last block, so this holds even when N is not a 128-multiple.
    if N <= 128:
        tn = N  # full-extent block is allowed when it equals the array dim
    else:
        tn = min(2048, _round_up(N, 128))

    # Sublane dim: fill the byte budget, rounded to the packed sublane count;
    # full extent when the whole array fits in one block row-wise.
    rows_budget = max(sub, _TARGET_BLOCK_BYTES // max(1, tn * itemsize))
    tm = (rows_budget // sub) * sub
    if tm >= M:
        tm = M  # full-extent allowed even when M is not a sublane multiple

    # Guarantee >= _MIN_GRID_STEPS grid steps for medium+ inputs so the default
    # Buffered(2) pipeline can overlap DMA with compute on every core.
    total_bytes = M * N * itemsize
    if total_bytes >= _PIPELINE_BYTES_THRESHOLD:
        def steps(tm_, tn_):
            return _cdiv(M, tm_) * _cdiv(N, tn_)

        while steps(tm, tn) < _MIN_GRID_STEPS and tm > sub:
            new_tm = _round_up(_cdiv(tm, 2), sub)
            if new_tm >= tm:
                break
            tm = new_tm
        while steps(tm, tn) < _MIN_GRID_STEPS and tn > 128:
            new_tn = _round_up(_cdiv(tn, 2), 128)
            if new_tn >= tn:
                break
            tn = new_tn

    return tm, tn


def relu_forward(x, *, in_place=False):
    """Pallas ReLU forward.

    Accepts 1-D or 2-D input; 1-D inputs return shape (1, N) to match the
    PyTorch module (`x = x.view(1, -1)`).  Set in_place=True to alias the
    output onto the input buffer (caller must allow donation).
    """
    if x.ndim == 1:
        n_total = x.shape[0]
        # Fold the raw 1-D vector directly into a lane/sublane-dense 2-D work
        # array in a single reshape (no (1, -1) intermediate); fall back to a
        # native single-row (1, N) block when no clean 128-multiple fold exists.
        work = None
        for cols in (2048, 1024, 512, 256, 128):
            if n_total % cols == 0:
                work = x.reshape(n_total // cols, cols)
                break
        if work is None:
            work = x.reshape(1, n_total)
        out_shape = (1, n_total)
    else:
        assert x.ndim == 2, "ReLU kernel expects a 1-D or 2-D input"
        work = x
        out_shape = x.shape

    Mw, Nw = work.shape
    tm, tn = _choose_tiles(Mw, Nw, work.dtype)
    grid = (pl.cdiv(Mw, tm), pl.cdiv(Nw, tn))

    itemsize = jnp.dtype(work.dtype).itemsize
    cost = pl.CostEstimate(
        flops=Mw * Nw,
        transcendentals=0,
        bytes_accessed=2 * Mw * Nw * itemsize,
    )

    out = pl.pallas_call(
        _relu_kernel,
        out_shape=jax.ShapeDtypeStruct((Mw, Nw), work.dtype),
        grid_spec=pltpu.PrefetchScalarGridSpec(
            num_scalar_prefetch=0,
            grid=grid,
            in_specs=[pl.BlockSpec((tm, tn), lambda i, j: (i, j))],
            out_specs=pl.BlockSpec((tm, tn), lambda i, j: (i, j)),
        ),
        compiler_params=pltpu.CompilerParams(
            dimension_semantics=("parallel", "parallel"),
            vmem_limit_bytes=_VMEM_LIMIT_BYTES,
        ),
        cost_estimate=cost,
        input_output_aliases=({0: 0} if in_place else {}),
    )(work)

    if out.shape != out_shape:
        out = out.reshape(out_shape)
    return out


if __name__ == "__main__":
    key = jax.random.PRNGKey(0)
    k0, k1, k2, k3 = jax.random.split(key, 4)

    # Small 2-D activation matrix (batch, hidden) as the module implies.
    x = jax.random.normal(k0, (8, 32), dtype=jnp.float32)
    out = jax.block_until_ready(relu_forward(x))
    assert out.shape == x.shape
    assert jnp.array_equal(out, jnp.maximum(x, 0.0)), "Pallas ReLU mismatch"

    # Lane-dense shape (exercises the standard tiled path).
    xw = jax.random.normal(k1, (64, 256), dtype=jnp.float32)
    outw = jax.block_until_ready(relu_forward(xw))
    assert jnp.array_equal(outw, jnp.maximum(xw, 0.0)), "Pallas ReLU (wide) mismatch"

    # Non-128-multiple width (exercises the ragged / masked lane-tile path).
    xr = jax.random.normal(k2, (16, 200), dtype=jnp.float32)
    outr = jax.block_until_ready(relu_forward(xr))
    assert jnp.array_equal(outr, jnp.maximum(xr, 0.0)), "Pallas ReLU (ragged) mismatch"

    # 1-D path: module views it as (1, -1); internally folded lane-dense.
    x1d = jax.random.normal(k3, (384,), dtype=jnp.float32)
    out1d = jax.block_until_ready(relu_forward(x1d))
    assert out1d.shape == (1, 384)
    assert jnp.array_equal(out1d, jnp.maximum(x1d, 0.0).reshape(1, -1)), \
        "Pallas ReLU (1-D path) mismatch"

    print("KERNEL_OK")
</pallas_src>

<mosaic_0001>
module attributes {stable_mosaic.version = 11 : i64} {
  func.func @_relu_kernel(%arg0: i32, %arg1: i32, %arg2: memref<8x32xf32, #tpu.memory_space<vmem>>, %arg3: memref<8x32xf32, #tpu.memory_space<vmem>>) attributes {dimension_semantics = [#tpu.dimension_semantics<parallel>, #tpu.dimension_semantics<parallel>], iteration_bounds = array<i64: 1, 1>, scalar_prefetch = 0 : i64, scratch_operands = 0 : i64, tpu.core_type = #tpu.core_type<tc>, window_params = [{transform_indices = @transform_0, window_bounds = array<i64: 8, 32>}, {transform_indices = @transform_1, window_bounds = array<i64: 8, 32>}]} {
    %c0 = arith.constant 0 : index
    %c0_0 = arith.constant 0 : index
    %0 = vector.load %arg2[%c0, %c0_0] : memref<8x32xf32, #tpu.memory_space<vmem>>, vector<8x32xf32>
    %cst = arith.constant 0.000000e+00 : f32
    %1 = vector.broadcast %cst : f32 to vector<8x32xf32>
    %2 = arith.maximumf %0, %1 : vector<8x32xf32>
    %c0_1 = arith.constant 0 : index
    %c0_2 = arith.constant 0 : index
    %3 = vector.load %arg3[%c0_1, %c0_2] : memref<8x32xf32, #tpu.memory_space<vmem>>, vector<8x32xf32>
    tpu.vector_store %arg3[%c0_1, %c0_2], %2 {strides = array<i32>} : memref<8x32xf32, #tpu.memory_space<vmem>>, vector<8x32xf32>,
    return
  }
  func.func @transform_0(%arg0: i32, %arg1: i32) -> (i32, i32) {
    %c0_i32 = arith.constant 0 : i32
    return %arg0, %arg1 : i32, i32
  }
  func.func @transform_1(%arg0: i32, %arg1: i32) -> (i32, i32) {
    %c0_i32 = arith.constant 0 : i32
    return %arg0, %arg1 : i32, i32
  }
}

</mosaic_0001>

<llo_original>
// kernel: tpu_custom_call.1
$region0: #{tpu_custom_call.1}
  #allocation0 [shape = 'u32[]', space=smem, size = 0x4, offset = 0x4, fixed_abs, tag = 'smem constant byte address 0x4 - core index']
  #allocation1 [shape = 'u32[144,128]{1,0:T(1,128)}', space=vmem, size = 0x12000, scoped, tag = 'internal scratch']
  %s0 = inlined_call_operand.hbm [shape: f32[8,32], index: 0, kind: input, shape index: {}]
  %s1 = inlined_call_operand.hbm [shape: f32[8,32], index: 1, kind: output, shape index: {}]
  %s2 = sld [smem:[#allocation0]]
  $region18: #{tpu_custom_call.1} parent=0
    _
  %s4 = ssub.s32 1, %s2
  %s5 = scalar_select 0, %s4, %s2
  $region1: #{tpu_custom_call.1} parent=0
    #allocation2 [shape = 'u8[4096]{0}', space=vmem, size = 0x1000, scoped, tag = 'input window, operand 0, single buffered']
    #allocation3 [shape = 's32[1]{0}', space=sflag, size = 0x4, scoped, tag = 'scoped memory for tpu_custom_call.1']
    #allocation4 [shape = 's32[1]{0}', space=sflag, size = 0x4, scoped, tag = 'scoped memory for tpu_custom_call.1']
    #allocation5 [shape = 'u8[4096]{0}', space=vmem, size = 0x1000, scoped, tag = 'output window, operand 0, single buffered']
    %6 = vsyncpa [#allocation3], 0
    %7 = vsyncpa [#allocation4], 0
    // Predicated region
    $region2: #{tpu_custom_call.1} parent=1 // pred_check
      _
    $region3: #{tpu_custom_call.1} parent=1 // pred_check_branch
      %9 = sbr.rel (0) target = $region5
    $region4: #{tpu_custom_call.1} parent=1 // pred_region
      %s11 = ssub.s32 128, 128
      %12 = vsyncadd [#allocation3], %s11
      %s14 = sshll.u32 [#allocation2], 4
      %s15 = int_to_ptr.vmem [resolvable:$true] %s14
      %17 = dma.hbm_to_vmem [thread:$0]  %s0, 128, %s15, [#allocation3]
    $region5: #{tpu_custom_call.1} parent=1 // pred_fallthru
      _
    // Predicated region
    $region6: #{tpu_custom_call.1} parent=1 // pred_check
      _
    $region7: #{tpu_custom_call.1} parent=1 // pred_check_branch
      %19 = sbr.rel (0) target = $region9
    $region8: #{tpu_custom_call.1} parent=1 // pred_region
      %20 = dma.done [#allocation3], 128
    $region9: #{tpu_custom_call.1} parent=1 // pred_fallthru
      _
    %v21 = vld [vmem:[#allocation2] sm:$0xff]
    %v22 = vmax.f32 %v21, 0.0
    %vm23 = vcmask 261120
    %24 = vst.msk [vmem:[#allocation5] sm:$0xff] %vm23, %v22
    // Predicated region
    $region10: #{tpu_custom_call.1} parent=1 // pred_check
      _
    $region11: #{tpu_custom_call.1} parent=1 // pred_check_branch
      %26 = sbr.rel (0) target = $region13
    $region12: #{tpu_custom_call.1} parent=1 // pred_region
      %s28 = ssub.s32 128, 128
      %29 = vsyncadd [#allocation4], %s28
      %s31 = sshll.u32 [#allocation5], 4
      %s32 = int_to_ptr.vmem [resolvable:$true] %s31
      %34 = dma.vmem_to_hbm [thread:$0]  %s32, 128, %s1, [#allocation4]
    $region13: #{tpu_custom_call.1} parent=1 // pred_fallthru
      _
    // Predicated region
    $region14: #{tpu_custom_call.1} parent=1 // pred_check
      _
    $region15: #{tpu_custom_call.1} parent=1 // pred_check_branch
      %36 = sbr.rel (0) target = $region17
    $region16: #{tpu_custom_call.1} parent=1 // pred_region
      %37 = dma.done [#allocation4], 128
    $region17: #{tpu_custom_call.1} parent=1 // pred_fallthru
      _
    %38 = vsyncpa [#allocation3], 1
    %39 = vsyncpa [#allocation4], 1

</llo_original>
